<compile_context>
chip_gen: v7x
topology: tpu7x:2x2x1
jax: 0.10.0
libtpu: 0.0.40
codegen_flags: <defaults>
</compile_context>

<pallas_src>
import functools

import jax
import jax.numpy as jnp
from jax.experimental import pallas as pl
from jax.experimental.pallas import tpu as pltpu


def _round_up(x: int, m: int) -> int:
    return ((x + m - 1) // m) * m


def _largest_div_mult128(n: int, cap: int) -> int:
    """Largest multiple of 128 that divides n and is <= cap (assumes n % 128 == 0)."""
    best = 128
    t = 128
    while t <= min(cap, n):
        if n % t == 0:
            best = t
        t += 128
    return best


def _bf16_exp_supported() -> bool:
    """bf16 EUP exists on v6e/v7x; v5e (and unknown chips) fall back to f32 exp."""
    try:
        kind = jax.devices()[0].device_kind.lower()
    except Exception:
        return False
    return ("v6" in kind) or ("v7" in kind)


def _pam_kernel(fb_ref, fc_ref, fd_ref, xr_ref, alpha_ref, o_ref,
                m_sc, l_sc, acc_sc, *, hw, tk, mask_keys, exp_bf16):
    """One (batch, query-tile, key-tile) grid step of flash-style position attention.

    fb_ref : (1, Kq, TQ) bf16  query features, channel-major (lane-dense queries)
    fc_ref : (1, TK, Kq) bf16  key features, key-major
    fd_ref : (1, C,  TK) bf16  value features, channel-major
    xr_ref : (1, C,  TQ) f32   residual input x
    alpha  : (1,) f32 in SMEM
    o_ref  : (1, C,  TQ)
    """
    ki = pl.program_id(2)
    nk = pl.num_programs(2)

    @pl.when(ki == 0)
    def _init():
        m_sc[...] = jnp.full_like(m_sc, -jnp.inf)
        l_sc[...] = jnp.zeros_like(l_sc)
        acc_sc[...] = jnp.zeros_like(acc_sc)

    # Scores in native MXU orientation: s[k, q] = f_c[key k] . f_b[query q]  -> (TK, TQ).
    s = jnp.dot(fc_ref[0], fb_ref[0], preferred_element_type=jnp.float32)

    if mask_keys:
        # Padded (fake) keys past the real spatial extent are excluded from the softmax.
        key_idx = ki * tk + jax.lax.broadcasted_iota(jnp.int32, (tk, 1), 0)
        s = jnp.where(key_idx < hw, s, jnp.float32(-1e30))

    # Online softmax over the key axis (axis 0 of s), bookkeeping kept as (1, TQ) rows.
    m_prev = m_sc[...]
    m_new = jnp.maximum(m_prev, jnp.max(s, axis=0, keepdims=True))
    corr = jnp.exp(m_prev - m_new)
    s_shift = s - m_new
    if exp_bf16:
        p = jnp.exp(s_shift.astype(jnp.bfloat16))       # bf16 EUP (v6e / v7x)
    else:
        p = jnp.exp(s_shift).astype(jnp.bfloat16)       # f32 EUP (v5e-safe)

    l_sc[...] = corr * l_sc[...] + jnp.sum(p.astype(jnp.float32), axis=0, keepdims=True)
    # Values: acc(C, TQ) += f_d(C, TK) @ p(TK, TQ), native MXU orientation, f32 acc.
    acc_sc[...] = corr * acc_sc[...] + jnp.dot(fd_ref[0], p,
                                               preferred_element_type=jnp.float32)
    m_sc[...] = m_new

    @pl.when(ki == nk - 1)
    def _finalize():
        inv_l = pl.reciprocal(l_sc[...], approx=True)   # EUP, replaces per-element divides
        o_ref[0] = (alpha_ref[0] * (acc_sc[...] * inv_l) + xr_ref[0]).astype(o_ref.dtype)


def position_attention_pallas(x_nchw, Wb, bb, Wc, bc, Wd, bd, alpha,
                              *, max_tq=512, max_tk=1024):
    """x_nchw: (B, C, H, W) f32. 1x1-conv weights given as (out, in)."""
    B, C, H, W = x_nchw.shape
    HW = H * W
    C8 = Wb.shape[0]
    f32, bf16 = jnp.float32, jnp.bfloat16

    xf = x_nchw.reshape(B, C, HW).astype(f32)

    # ---- 1x1-conv projections hoisted to XLA (dense MXU work done once per element;
    # the kernel only does the O(HW^2) attention part). Compute in f32, round to bf16 once.
    fb_t = jnp.einsum('oc,bcn->bon', Wb, xf) + bb[None, :, None]   # (B, C8, HW) queries
    fc_k = jnp.einsum('oc,bcn->bno', Wc, xf) + bc[None, None, :]   # (B, HW, C8) keys
    fd_t = jnp.einsum('oc,bcn->bon', Wd, xf) + bd[None, :, None]   # (B, C,  HW) values

    # ---- tiling: pad the score-contraction dim to a sublane multiple and HW to a
    # 128-friendly size (lane-dense output stores; handles awkward H*W via key masking).
    Kq = max(8, _round_up(C8, 8))
    HWp = _round_up(HW, 128) if HW >= 128 else _round_up(HW, 8)

    try:
        vmem_cap = int(pltpu.get_tpu_info().vmem_capacity_bytes)
    except Exception:
        vmem_cap = 64 << 20   # conservative: v7x physical VMEM per TensorCore

    def ws(tq, tk):
        # double-buffered input blocks + output blocks + scratch + big temporaries
        return (2 * (Kq * tq * 2 + tk * Kq * 2 + C * tk * 2 + C * tq * 4)
                + 2 * C * tq * 4
                + (2 * tq + C * tq) * 4
                + 3 * tk * tq * 4 + C * tq * 4)

    if HWp % 128 == 0:
        budget = int(0.55 * vmem_cap)
        TQ = _largest_div_mult128(HWp, max_tq)
        TK = _largest_div_mult128(HWp, max_tk)
        while ws(TQ, TK) > budget and (TQ > 128 or TK > 128):
            if TK >= TQ and TK > 128:
                TK = _largest_div_mult128(HWp, TK // 2)
            else:
                TQ = _largest_div_mult128(HWp, TQ // 2)
        # v7x megacore: make sure both TensorCores get a slice of the parallel axes.
        if B * (HWp // TQ) < 2 and TQ > 128:
            TQ = _largest_div_mult128(HWp, TQ // 2)
    else:
        TQ = TK = HWp   # small spatial sizes: single full-extent tile

    nq, nk = HWp // TQ, HWp // TK

    def pad_to(a, axis, target):
        pad = target - a.shape[axis]
        if pad == 0:
            return a
        widths = [(0, 0)] * a.ndim
        widths[axis] = (0, pad)
        return jnp.pad(a, widths)

    fb_t = pad_to(pad_to(fb_t, 1, Kq), 2, HWp).astype(bf16)   # (B, Kq, HWp)
    fc_k = pad_to(pad_to(fc_k, 2, Kq), 1, HWp).astype(bf16)   # (B, HWp, Kq)
    fd_t = pad_to(fd_t, 2, HWp).astype(bf16)                  # (B, C, HWp)
    x_res = pad_to(xf, 2, HWp)                                # (B, C, HWp) f32 residual
    alpha1 = alpha.reshape(1).astype(f32)

    vmem_limit = int(min(max(2 * ws(TQ, TK), 16 << 20), int(0.75 * vmem_cap)))

    flops = B * (2 * HWp * HWp * Kq + 2 * HWp * HWp * C)          # scores + p @ f_d
    bytes_acc = B * (HWp * Kq * 2 + nq * HWp * (Kq + C) * 2       # fb once; fc/fd per q-tile
                     + HWp * C * 4 + HWp * C * 4)                 # x residual + output
    cost = pl.CostEstimate(flops=int(flops),
                           transcendentals=int(B * HWp * HWp),
                           bytes_accessed=int(bytes_acc))

    kernel = functools.partial(_pam_kernel, hw=HW, tk=TK,
                               mask_keys=(HWp != HW), exp_bf16=_bf16_exp_supported())

    # TODO(synk): if a trace shows exposed DMA on the fc/fd key streams at small C,
    # add pipeline_mode=pl.Buffered(3) to those BlockSpecs (re-check v7x 64 MiB budget).
    out_flat = pl.pallas_call(
        kernel,
        out_shape=jax.ShapeDtypeStruct((B, C, HWp), x_nchw.dtype),
        grid_spec=pltpu.PrefetchScalarGridSpec(
            num_scalar_prefetch=0,
            grid=(B, nq, nk),
            in_specs=[
                pl.BlockSpec((1, Kq, TQ), lambda b, qi, ki: (b, 0, qi)),   # query feats
                pl.BlockSpec((1, TK, Kq), lambda b, qi, ki: (b, ki, 0)),   # key feats
                pl.BlockSpec((1, C, TK), lambda b, qi, ki: (b, 0, ki)),    # value feats
                pl.BlockSpec((1, C, TQ), lambda b, qi, ki: (b, 0, qi)),    # residual x
                pl.BlockSpec(memory_space=pltpu.MemorySpace.SMEM),         # alpha scalar
            ],
            out_specs=pl.BlockSpec((1, C, TQ), lambda b, qi, ki: (b, 0, qi)),
            scratch_shapes=[
                pltpu.VMEM((1, TQ), jnp.float32),    # running max
                pltpu.VMEM((1, TQ), jnp.float32),    # running sum
                pltpu.VMEM((C, TQ), jnp.float32),    # output accumulator (lane-dense)
            ]),
        compiler_params=pltpu.CompilerParams(
            dimension_semantics=("parallel", "parallel", "arbitrary"),
            vmem_limit_bytes=vmem_limit),
        cost_estimate=cost,
    )(fb_t, fc_k, fd_t, x_res, alpha1)

    return out_flat[:, :, :HW].reshape(B, C, H, W)


def position_attention_ref(x, Wb, bb, Wc, bc, Wd, bd, alpha):
    """Pure-JAX reference mirroring the PyTorch forward (NCHW, f32)."""
    B, C, H, W = x.shape
    HW = H * W
    xf = x.reshape(B, C, HW)
    fb = jnp.einsum('oc,bcn->bon', Wb, xf) + bb[None, :, None]   # (B, C8, HW)
    fc = jnp.einsum('oc,bcn->bon', Wc, xf) + bc[None, :, None]   # (B, C8, HW)
    fd = jnp.einsum('oc,bcn->bon', Wd, xf) + bd[None, :, None]   # (B, C, HW)
    feat_b = jnp.transpose(fb, (0, 2, 1))                        # (B, HW, C8)
    s = jnp.einsum('bnk,bkm->bnm', feat_b, fc)                   # (B, HW, HW)
    a = jax.nn.softmax(s, axis=-1)
    fe = jnp.einsum('bcm,bnm->bcn', fd, a)                       # feat_d @ A^T
    return alpha.reshape(()) * fe.reshape(B, C, H, W) + x


if __name__ == "__main__":
    key = jax.random.PRNGKey(0)
    B, C, H, W = 2, 16, 16, 16          # in_channels=16 -> C//8 = 2
    C8 = C // 8

    k = jax.random.split(key, 8)
    x = jax.random.normal(k[0], (B, C, H, W), jnp.float32)
    # Deterministic synthetic 1x1-conv parameters (stored as (out, in)).
    Wb = 0.1 * jax.random.normal(k[1], (C8, C), jnp.float32)
    bb = 0.1 * jax.random.normal(k[2], (C8,), jnp.float32)
    Wc = 0.1 * jax.random.normal(k[3], (C8, C), jnp.float32)
    bc = 0.1 * jax.random.normal(k[4], (C8,), jnp.float32)
    Wd = 0.1 * jax.random.normal(k[5], (C, C), jnp.float32)
    bd = 0.1 * jax.random.normal(k[6], (C,), jnp.float32)
    # nn.Parameter(torch.zeros(1)) would make out == x; use a nonzero value so the
    # attention path is actually exercised (set to 0.0 to match a fresh-init module).
    alpha = jnp.array([0.5], jnp.float32)

    # max_tq/max_tk=128 at HW=256 -> grid (2, 2, 2): exercises the online-softmax key
    # loop and the multi-tile query axis.
    out = position_attention_pallas(x, Wb, bb, Wc, bc, Wd, bd, alpha,
                                    max_tq=128, max_tk=128)
    out = jax.block_until_ready(out)

    ref = position_attention_ref(x, Wb, bb, Wc, bc, Wd, bd, alpha)
    assert out.shape == (B, C, H, W)
    # bf16 MXU operands (f32 accumulation) -> looser tolerance than pure f32.
    assert jnp.allclose(out, ref, rtol=2e-2, atol=2e-2), "mismatch vs reference"

    print("KERNEL_OK")
</pallas_src>

<mosaic_0001>
module attributes {stable_mosaic.version = 11 : i64} {
  func.func @_pam_kernel(%arg0: i32, %arg1: i32, %arg2: i32, %arg3: memref<1x8x128xbf16, #tpu.memory_space<vmem>>, %arg4: memref<1x128x8xbf16, #tpu.memory_space<vmem>>, %arg5: memref<1x16x128xbf16, #tpu.memory_space<vmem>>, %arg6: memref<1x16x128xf32, #tpu.memory_space<vmem>>, %arg7: memref<1xf32, #tpu.memory_space<smem>>, %arg8: memref<1x16x128xf32, #tpu.memory_space<vmem>>, %arg9: memref<1x128xf32, #tpu.memory_space<vmem>>, %arg10: memref<1x128xf32, #tpu.memory_space<vmem>>, %arg11: memref<16x128xf32, #tpu.memory_space<vmem>>) attributes {dimension_semantics = [#tpu.dimension_semantics<parallel>, #tpu.dimension_semantics<parallel>, #tpu.dimension_semantics<arbitrary>], iteration_bounds = array<i64: 2, 2, 2>, scalar_prefetch = 0 : i64, scratch_operands = 3 : i64, tpu.core_type = #tpu.core_type<tc>, window_params = [{transform_indices = @transform_0, window_bounds = array<i64: 1, 8, 128>}, {transform_indices = @transform_1, window_bounds = array<i64: 1, 128, 8>}, {transform_indices = @transform_2, window_bounds = array<i64: 1, 16, 128>}, {transform_indices = @transform_3, window_bounds = array<i64: 1, 16, 128>}, {transform_indices = @transform_4, window_bounds = array<i64: 1>}, {transform_indices = @transform_5, window_bounds = array<i64: 1, 16, 128>}]} {
    %c0_i32 = arith.constant 0 : i32
    %0 = arith.cmpi eq, %arg2, %c0_i32 : i32
    %1 = arith.extui %0 : i1 to i32
    %c0_i32_0 = arith.constant 0 : i32
    %2 = arith.cmpi ne, %1, %c0_i32_0 : i32
    scf.if %2 {
      %cst_25 = arith.constant 0xFF800000 : f32
      %37 = vector.broadcast %cst_25 : f32 to vector<1x128xf32>
      %c0_26 = arith.constant 0 : index
      %c0_27 = arith.constant 0 : index
      %38 = vector.load %arg9[%c0_26, %c0_27] : memref<1x128xf32, #tpu.memory_space<vmem>>, vector<1x128xf32>
      tpu.vector_store %arg9[%c0_26, %c0_27], %37 {strides = array<i32>} : memref<1x128xf32, #tpu.memory_space<vmem>>, vector<1x128xf32>,
      %cst_28 = arith.constant 0.000000e+00 : f32
      %39 = vector.broadcast %cst_28 : f32 to vector<1x128xf32>
      %c0_29 = arith.constant 0 : index
      %c0_30 = arith.constant 0 : index
      %40 = vector.load %arg10[%c0_29, %c0_30] : memref<1x128xf32, #tpu.memory_space<vmem>>, vector<1x128xf32>
      tpu.vector_store %arg10[%c0_29, %c0_30], %39 {strides = array<i32>} : memref<1x128xf32, #tpu.memory_space<vmem>>, vector<1x128xf32>,
      %cst_31 = arith.constant 0.000000e+00 : f32
      %41 = vector.broadcast %cst_31 : f32 to vector<16x128xf32>
      %c0_32 = arith.constant 0 : index
      %c0_33 = arith.constant 0 : index
      %42 = vector.load %arg11[%c0_32, %c0_33] : memref<16x128xf32, #tpu.memory_space<vmem>>, vector<16x128xf32>
      tpu.vector_store %arg11[%c0_32, %c0_33], %41 {strides = array<i32>} : memref<16x128xf32, #tpu.memory_space<vmem>>, vector<16x128xf32>,
    } else {
    }
    %c0 = arith.constant 0 : index
    %c0_1 = arith.constant 0 : index
    %c0_2 = arith.constant 0 : index
    %3 = vector.load %arg4[%c0, %c0_1, %c0_2] : memref<1x128x8xbf16, #tpu.memory_space<vmem>>, vector<1x128x8xbf16>
    %4 = vector.shape_cast %3 : vector<1x128x8xbf16> to vector<128x8xbf16>
    %c0_3 = arith.constant 0 : index
    %c0_4 = arith.constant 0 : index
    %c0_5 = arith.constant 0 : index
    %5 = vector.load %arg3[%c0_3, %c0_4, %c0_5] : memref<1x8x128xbf16, #tpu.memory_space<vmem>>, vector<1x8x128xbf16>
    %6 = vector.shape_cast %5 : vector<1x8x128xbf16> to vector<8x128xbf16>
    %cst = arith.constant dense<0.000000e+00> : vector<128x128xf32>
    %7 = tpu.matmul %4, %6, %cst {dimension_numbers = #tpu.dot_dimension_numbers<[1], [0], [0], [1], [0, 0, 1, 1], [], []>} : vector<128x8xbf16>, vector<8x128xbf16>, vector<128x128xf32> -> vector<128x128xf32>
    %c0_6 = arith.constant 0 : index
    %c0_7 = arith.constant 0 : index
    %8 = vector.load %arg9[%c0_6, %c0_7] : memref<1x128xf32, #tpu.memory_space<vmem>>, vector<1x128xf32>
    %cst_8 = arith.constant dense<0xFF800000> : vector<128xf32>
    %9 = vector.multi_reduction <maximumf>, %7, %cst_8 [0] : vector<128x128xf32> to vector<128xf32>
    %10 = vector.shape_cast %9 : vector<128xf32> to vector<1x128xf32>
    %11 = arith.maximumf %8, %10 : vector<1x128xf32>
    %12 = arith.subf %8, %11 : vector<1x128xf32>
    %13 = math.exp %12 : vector<1x128xf32>
    %14 = vector.broadcast %11 : vector<1x128xf32> to vector<128x128xf32>
    %15 = arith.subf %7, %14 : vector<128x128xf32>
    %16 = math.exp %15 : vector<128x128xf32>
    %17 = arith.truncf %16 : vector<128x128xf32> to vector<128x128xbf16>
    %c0_9 = arith.constant 0 : index
    %c0_10 = arith.constant 0 : index
    %18 = vector.load %arg10[%c0_9, %c0_10] : memref<1x128xf32, #tpu.memory_space<vmem>>, vector<1x128xf32>
    %19 = arith.mulf %13, %18 : vector<1x128xf32>
    %20 = arith.extf %17 : vector<128x128xbf16> to vector<128x128xf32>
    %cst_11 = arith.constant dense<0.000000e+00> : vector<128xf32>
    %21 = vector.multi_reduction <add>, %20, %cst_11 [0] : vector<128x128xf32> to vector<128xf32>
    %22 = vector.shape_cast %21 : vector<128xf32> to vector<1x128xf32>
    %23 = arith.addf %19, %22 : vector<1x128xf32>
    %c0_12 = arith.constant 0 : index
    %c0_13 = arith.constant 0 : index
    %24 = vector.load %arg10[%c0_12, %c0_13] : memref<1x128xf32, #tpu.memory_space<vmem>>, vector<1x128xf32>
    tpu.vector_store %arg10[%c0_12, %c0_13], %23 {strides = array<i32>} : memref<1x128xf32, #tpu.memory_space<vmem>>, vector<1x128xf32>,
    %c0_14 = arith.constant 0 : index
    %c0_15 = arith.constant 0 : index
    %25 = vector.load %arg11[%c0_14, %c0_15] : memref<16x128xf32, #tpu.memory_space<vmem>>, vector<16x128xf32>
    %26 = vector.broadcast %13 : vector<1x128xf32> to vector<16x128xf32>
    %27 = arith.mulf %26, %25 : vector<16x128xf32>
    %c0_16 = arith.constant 0 : index
    %c0_17 = arith.constant 0 : index
    %c0_18 = arith.constant 0 : index
    %28 = vector.load %arg5[%c0_16, %c0_17, %c0_18] : memref<1x16x128xbf16, #tpu.memory_space<vmem>>, vector<1x16x128xbf16>
    %29 = vector.shape_cast %28 : vector<1x16x128xbf16> to vector<16x128xbf16>
    %cst_19 = arith.constant dense<0.000000e+00> : vector<16x128xf32>
    %30 = tpu.matmul %29, %17, %cst_19 {dimension_numbers = #tpu.dot_dimension_numbers<[1], [0], [0], [1], [0, 0, 1, 1], [], []>} : vector<16x128xbf16>, vector<128x128xbf16>, vector<16x128xf32> -> vector<16x128xf32>
    %31 = arith.addf %27, %30 : vector<16x128xf32>
    %c0_20 = arith.constant 0 : index
    %c0_21 = arith.constant 0 : index
    %32 = vector.load %arg11[%c0_20, %c0_21] : memref<16x128xf32, #tpu.memory_space<vmem>>, vector<16x128xf32>
    tpu.vector_store %arg11[%c0_20, %c0_21], %31 {strides = array<i32>} : memref<16x128xf32, #tpu.memory_space<vmem>>, vector<16x128xf32>,
    %c0_22 = arith.constant 0 : index
    %c0_23 = arith.constant 0 : index
    %33 = vector.load %arg9[%c0_22, %c0_23] : memref<1x128xf32, #tpu.memory_space<vmem>>, vector<1x128xf32>
    tpu.vector_store %arg9[%c0_22, %c0_23], %11 {strides = array<i32>} : memref<1x128xf32, #tpu.memory_space<vmem>>, vector<1x128xf32>,
    %c1_i32 = arith.constant 1 : i32
    %34 = arith.cmpi eq, %arg2, %c1_i32 : i32
    %35 = arith.extui %34 : i1 to i32
    %c0_i32_24 = arith.constant 0 : i32
    %36 = arith.cmpi ne, %35, %c0_i32_24 : i32
    scf.if %36 {
      %c0_25 = arith.constant 0 : index
      %c0_26 = arith.constant 0 : index
      %37 = vector.load %arg10[%c0_25, %c0_26] : memref<1x128xf32, #tpu.memory_space<vmem>>, vector<1x128xf32>
      %38 = tpu.reciprocal %37 {approx = true} : vector<1x128xf32> -> vector<1x128xf32>
      %c0_27 = arith.constant 0 : index
      %39 = memref.load %arg7[%c0_27] : memref<1xf32, #tpu.memory_space<smem>>
      %c0_28 = arith.constant 0 : index
      %c0_29 = arith.constant 0 : index
      %40 = vector.load %arg11[%c0_28, %c0_29] : memref<16x128xf32, #tpu.memory_space<vmem>>, vector<16x128xf32>
      %41 = vector.broadcast %38 : vector<1x128xf32> to vector<16x128xf32>
      %42 = arith.mulf %40, %41 : vector<16x128xf32>
      %43 = vector.broadcast %39 : f32 to vector<16x128xf32>
      %44 = arith.mulf %43, %42 : vector<16x128xf32>
      %c0_30 = arith.constant 0 : index
      %c0_31 = arith.constant 0 : index
      %c0_32 = arith.constant 0 : index
      %45 = vector.load %arg6[%c0_30, %c0_31, %c0_32] : memref<1x16x128xf32, #tpu.memory_space<vmem>>, vector<1x16x128xf32>
      %46 = vector.shape_cast %45 : vector<1x16x128xf32> to vector<16x128xf32>
      %47 = arith.addf %44, %46 : vector<16x128xf32>
      %c0_33 = arith.constant 0 : index
      %c0_34 = arith.constant 0 : index
      %c0_35 = arith.constant 0 : index
      %48 = vector.load %arg8[%c0_33, %c0_34, %c0_35] : memref<1x16x128xf32, #tpu.memory_space<vmem>>, vector<1x16x128xf32>
      %49 = vector.shape_cast %48 : vector<1x16x128xf32> to vector<16x128xf32>
      %50 = vector.shape_cast %47 : vector<16x128xf32> to vector<1x16x128xf32>
      tpu.vector_store %arg8[%c0_33, %c0_34, %c0_35], %50 {strides = array<i32>} : memref<1x16x128xf32, #tpu.memory_space<vmem>>, vector<1x16x128xf32>,
    } else {
    }
    return
  }
  func.func @transform_0(%arg0: i32, %arg1: i32, %arg2: i32) -> (i32, i32, i32) {
    %c0_i32 = arith.constant 0 : i32
    %c0_i32_0 = arith.constant 0 : i32
    return %arg0, %c0_i32, %arg1 : i32, i32, i32
  }
  func.func @transform_1(%arg0: i32, %arg1: i32, %arg2: i32) -> (i32, i32, i32) {
    %c0_i32 = arith.constant 0 : i32
    %c0_i32_0 = arith.constant 0 : i32
    return %arg0, %arg2, %c0_i32 : i32, i32, i32
  }
  func.func @transform_2(%arg0: i32, %arg1: i32, %arg2: i32) -> (i32, i32, i32) {
    %c0_i32 = arith.constant 0 : i32
    %c0_i32_0 = arith.constant 0 : i32
    return %arg0, %c0_i32, %arg2 : i32, i32, i32
  }
  func.func @transform_3(%arg0: i32, %arg1: i32, %arg2: i32) -> (i32, i32, i32) {
    %c0_i32 = arith.constant 0 : i32
    %c0_i32_0 = arith.constant 0 : i32
    return %arg0, %c0_i32, %arg1 : i32, i32, i32
  }
  func.func @transform_4(%arg0: i32, %arg1: i32, %arg2: i32) -> i32 {
    %c0_i32 = arith.constant 0 : i32
    %c0_i32_0 = arith.constant 0 : i32
    return %c0_i32 : i32
  }
  func.func @transform_5(%arg0: i32, %arg1: i32, %arg2: i32) -> (i32, i32, i32) {
    %c0_i32 = arith.constant 0 : i32
    %c0_i32_0 = arith.constant 0 : i32
    return %arg0, %c0_i32, %arg1 : i32, i32, i32
  }
}

</mosaic_0001>

<llo_original>
// kernel: tpu_custom_call.1
$region0: #{tpu_custom_call.1}
  #allocation0 [shape = 'u32[]', space=smem, size = 0x4, offset = 0x4, fixed_abs, tag = 'smem constant byte address 0x4 - core index']
  #allocation1 [shape = 'u32[144,128]{1,0:T(1,128)}', space=vmem, size = 0x12000, scoped, tag = 'internal scratch']
  #allocation2 [shape = 'f32[1,128]{1,0:T(1,128)}', space=vmem, size = 0x200, scoped, tag = 'scratch operand']
  #allocation3 [shape = 'f32[1,128]{1,0:T(1,128)}', space=vmem, size = 0x200, scoped, tag = 'scratch operand']
  #allocation4 [shape = 'f32[16,128]{1,0:T(8,128)}', space=vmem, size = 0x2000, scoped, tag = 'scratch operand']
  #allocation5 [shape = 'f32[1]{0:T(128)S(6)}', space=smem, size = 0x200, scoped, tag = 'scoped memory for tpu_custom_call.1']
  %s0 = inlined_call_operand.vmem [shape: bf16[2,8,256], index: 0, kind: input, shape index: {}]
  %s1 = inlined_call_operand.vmem [shape: bf16[2,256,8], index: 1, kind: input, shape index: {}]
  %s2 = inlined_call_operand.vmem [shape: bf16[2,16,256], index: 2, kind: input, shape index: {}]
  %s3 = inlined_call_operand.vmem [shape: f32[2,16,256], index: 3, kind: input, shape index: {}]
  %s4 = inlined_call_operand.<no memory space> [shape: f32[1], index: 4, kind: input, shape index: {}]
  %s5 = inlined_call_operand.hbm [shape: f32[2,16,256], index: 5, kind: output, shape index: {}]
  %s6 = sld [smem:[#allocation0]]
  $region140: #{tpu_custom_call.1} parent=0
    _
  %s8 = ssub.s32 1, %s6
  %s9 = scalar_select 0, %s8, %s6
  %10 = sst [smem:[#allocation5]] %s4
  $region1: #{tpu_custom_call.1} parent=0
    #allocation6 [shape = 'u8[8192]{0}', space=vmem, size = 0x2000, scoped, tag = 'input window, operand 2']
    #allocation7 [shape = 'u8[16384]{0}', space=vmem, size = 0x4000, scoped, tag = 'input window, operand 3']
    #allocation8 [shape = 'u8[16384]{0}', space=vmem, size = 0x4000, scoped, tag = 'output window, operand 0']
    #allocation9 [shape = 's32[2]{0}', space=sflag, size = 0x8, scoped, tag = 'scoped memory for tpu_custom_call.1']
    %11 = vsyncpa [#allocation9], 0
    %s12 = scalar_lea.sflag [#allocation9], 1
    %13 = vsyncpa %s12, 0
    loop: start=0, step=1, limit=10
    $region2: #{tpu_custom_call.1} parent=1 // loop_pre_header
      _
    $region3: #{tpu_custom_call.1} parent=1 // loop_header
      %s15 = sphi 0, %s19
      %p16 = scmp.ge.s32.totalorder %s15, 10
      %s22 = sphi 0, %s41
      %s23 = sphi 0, %s37
      %s24 = sphi 0, %s33
      %s25 = sphi 0, %s22
      %s26 = sphi 0, %s23
      %s27 = sphi 0, %s24
      %s28 = sphi 0, %s25
      %s29 = sphi 0, %s26
      %s30 = sphi 0, %s27
      %s46 = sphi 0, %s48
      %s49 = sphi 0, %s46
      %s50 = sphi 0, %s49
      %s66 = sphi 0, %s50
      %s74 = sphi 0, %s76
      %s77 = sphi 0, %s74
      %s78 = sphi 0, %s77
      %s94 = sphi 0, %s78
      %s102 = sphi 0, %s104
      %s105 = sphi 0, %s102
      %s106 = sphi 0, %s105
      %s122 = sphi 0, %s106
      %s130 = sphi 0, %s132
      %s133 = sphi 0, %s130
      %s134 = sphi 0, %s133
      %s150 = sphi 0, %s134
      %s154 = sphi 0, %s154
      %s156 = sphi 0, %s154
      %s157 = sphi 0, %s156
      %s171 = sphi 0, %s157
      %s179 = sphi 0, %s181
      %s182 = sphi 0, %s179
      %s183 = sphi 0, %s182
      %s199 = sphi 0, %s183
    $region4: #{tpu_custom_call.1} parent=1 // loop_header_branch
      %18 = sbr.rel (%p16) target = $region8
    $region5: #{tpu_custom_call.1} parent=1 // loop_body
      %s20 = ssub.s32 %s15, 1
      %s21 = ssub.s32 %s15, 2
      %s31 = sadd.s32 1, %s24
      %p32 = scmp.ge.s32.totalorder %s31, 2
      %s33 = scalar_select %p32, 0, %s31
      %s34 = sadd.s32 1, %s23
      %s35 = scalar_select %p32, %s34, %s23
      %p36 = scmp.ge.s32.totalorder %s35, 2
      %s37 = scalar_select %p36, 0, %s35
      %s38 = sadd.s32 1, %s22
      %s39 = scalar_select %p36, %s38, %s22
      %p40 = scmp.ge.s32.totalorder %s39, 2
      %s41 = scalar_select %p40, 0, %s39
      %s42 = ssub.s32 %s22, %s41
      %s43 = ssub.s32 %s23, %s37
      %s44 = sor.u32 %s42, %s43
      %p45 = scmp.eq.s32.totalorder %s44, 0
      %s47 = sadd.s32 %s46, 1
      %s48 = scalar_select %p45, %s46, %s47
      %p51 = pneg %p45
      %p52 = scmp.eq.s32.totalorder %s15, 7
      %p53 = por %p51, %p52
      %p54 = scmp.ne.s32.totalorder %s46, %s49
      %p55 = scmp.eq.s32.totalorder %s15, 0
      %p56 = por %p54, %p55
      %p57 = scmp.ne.s32.totalorder %s46, %s49
      %p58 = scmp.eq.s32.totalorder %s20, 7
      %p59 = por %p57, %p58
      %p60 = scmp.ne.s32.totalorder %s49, %s50
      %p61 = scmp.eq.s32.totalorder %s20, 0
      %p62 = por %p60, %p61
      %p63 = scmp.ne.s32.totalorder %s49, %s50
      %p64 = scmp.eq.s32.totalorder %s21, 7
      %p65 = por %p63, %p64
      %p67 = scmp.ne.s32.totalorder %s50, %s66
      %p68 = scmp.eq.s32.totalorder %s21, 0
      %p69 = por %p67, %p68
      %s70 = ssub.s32 %s22, %s41
      %s71 = ssub.s32 %s24, %s33
      %s72 = sor.u32 %s70, %s71
      %p73 = scmp.eq.s32.totalorder %s72, 0
      %s75 = sadd.s32 %s74, 1
      %s76 = scalar_select %p73, %s74, %s75
      %p79 = pneg %p73
      %p80 = scmp.eq.s32.totalorder %s15, 7
      %p81 = por %p79, %p80
      %p82 = scmp.ne.s32.totalorder %s74, %s77
      %p83 = scmp.eq.s32.totalorder %s15, 0
      %p84 = por %p82, %p83
      %p85 = scmp.ne.s32.totalorder %s74, %s77
      %p86 = scmp.eq.s32.totalorder %s20, 7
      %p87 = por %p85, %p86
      %p88 = scmp.ne.s32.totalorder %s77, %s78
      %p89 = scmp.eq.s32.totalorder %s20, 0
      %p90 = por %p88, %p89
      %p91 = scmp.ne.s32.totalorder %s77, %s78
      %p92 = scmp.eq.s32.totalorder %s21, 7
      %p93 = por %p91, %p92
      %p95 = scmp.ne.s32.totalorder %s78, %s94
      %p96 = scmp.eq.s32.totalorder %s21, 0
      %p97 = por %p95, %p96
      %s98 = ssub.s32 %s22, %s41
      %s99 = ssub.s32 %s24, %s33
      %s100 = sor.u32 %s98, %s99
      %p101 = scmp.eq.s32.totalorder %s100, 0
      %s103 = sadd.s32 %s102, 1
      %s104 = scalar_select %p101, %s102, %s103
      %p107 = pneg %p101
      %p108 = scmp.eq.s32.totalorder %s15, 7
      %p109 = por %p107, %p108
      %p110 = scmp.ne.s32.totalorder %s102, %s105
      %p111 = scmp.eq.s32.totalorder %s15, 0
      %p112 = por %p110, %p111
      %p113 = scmp.ne.s32.totalorder %s102, %s105
      %p114 = scmp.eq.s32.totalorder %s20, 7
      %p115 = por %p113, %p114
      %p116 = scmp.ne.s32.totalorder %s105, %s106
      %p117 = scmp.eq.s32.totalorder %s20, 0
      %p118 = por %p116, %p117
      %p119 = scmp.ne.s32.totalorder %s105, %s106
      %p120 = scmp.eq.s32.totalorder %s21, 7
      %p121 = por %p119, %p120
      %p123 = scmp.ne.s32.totalorder %s106, %s122
      %p124 = scmp.eq.s32.totalorder %s21, 0
      %p125 = por %p123, %p124
      %s126 = ssub.s32 %s22, %s41
      %s127 = ssub.s32 %s23, %s37
      %s128 = sor.u32 %s126, %s127
      %p129 = scmp.eq.s32.totalorder %s128, 0
      %s131 = sadd.s32 %s130, 1
      %s132 = scalar_select %p129, %s130, %s131
      %p135 = pneg %p129
      %p136 = scmp.eq.s32.totalorder %s15, 7
      %p137 = por %p135, %p136
      %p138 = scmp.ne.s32.totalorder %s130, %s133
      %p139 = scmp.eq.s32.totalorder %s15, 0
      %p140 = por %p138, %p139
      %p141 = scmp.ne.s32.totalorder %s130, %s133
      %p142 = scmp.eq.s32.totalorder %s20, 7
      %p143 = por %p141, %p142
      %p144 = scmp.ne.s32.totalorder %s133, %s134
      %p145 = scmp.eq.s32.totalorder %s20, 0
      %p146 = por %p144, %p145
      %p147 = scmp.ne.s32.totalorder %s133, %s134
      %p148 = scmp.eq.s32.totalorder %s21, 7
      %p149 = por %p147, %p148
      %p151 = scmp.ne.s32.totalorder %s134, %s150
      %p152 = scmp.eq.s32.totalorder %s21, 0
      %p153 = por %p151, %p152
      %s155 = sadd.s32 %s154, 1
      %p158 = scmp.eq.s32.totalorder %s15, 7
      %p159 = scmp.ne.s32.totalorder %s154, %s156
      %p160 = scmp.eq.s32.totalorder %s15, 0
      %p161 = por %p159, %p160
      %p162 = scmp.ne.s32.totalorder %s154, %s156
      %p163 = scmp.eq.s32.totalorder %s20, 7
      %p164 = por %p162, %p163
      %p165 = scmp.ne.s32.totalorder %s156, %s157
      %p166 = scmp.eq.s32.totalorder %s20, 0
      %p167 = por %p165, %p166
      %p168 = scmp.ne.s32.totalorder %s156, %s157
      %p169 = scmp.eq.s32.totalorder %s21, 7
      %p170 = por %p168, %p169
      %p172 = scmp.ne.s32.totalorder %s157, %s171
      %p173 = scmp.eq.s32.totalorder %s21, 0
      %p174 = por %p172, %p173
      %s175 = ssub.s32 %s22, %s41
      %s176 = ssub.s32 %s23, %s37
      %s177 = sor.u32 %s175, %s176
      %p178 = scmp.eq.s32.totalorder %s177, 0
      %s180 = sadd.s32 %s179, 1
      %s181 = scalar_select %p178, %s179, %s180
      %p184 = pneg %p178
      %p185 = scmp.eq.s32.totalorder %s15, 7
      %p186 = por %p184, %p185
      %p187 = scmp.ne.s32.totalorder %s179, %s182
      %p188 = scmp.eq.s32.totalorder %s15, 0
      %p189 = por %p187, %p188
      %p190 = scmp.ne.s32.totalorder %s179, %s182
      %p191 = scmp.eq.s32.totalorder %s20, 7
      %p192 = por %p190, %p191
      %p193 = scmp.ne.s32.totalorder %s182, %s183
      %p194 = scmp.eq.s32.totalorder %s20, 0
      %p195 = por %p193, %p194
      %p196 = scmp.ne.s32.totalorder %s182, %s183
      %p197 = scmp.eq.s32.totalorder %s21, 7
      %p198 = por %p196, %p197
      %p200 = scmp.ne.s32.totalorder %s183, %s199
      %p201 = scmp.eq.s32.totalorder %s21, 0
      %p202 = por %p200, %p201
      %p203 = scmp.le.s32.totalorder 1, %s15
      %p204 = scmp.lt.s32.totalorder %s15, 9
      %p205 = pnand %p203, %p204
      %p206 = pneg %p205
      // Predicated region
      $region9: #{tpu_custom_call.1} parent=5 // pred_check
        _
      $region10: #{tpu_custom_call.1} parent=5 // pred_check_branch
        %208 = sbr.rel (%p205) target = $region12
      $region11: #{tpu_custom_call.1} parent=5 // pred_region
        %s209 = ssub.s32 %s15, 1
        // Predicated region
        $region13: #{tpu_custom_call.1} parent=11 // pred_check
          %p210 = pneg %p167
        $region14: #{tpu_custom_call.1} parent=11 // pred_check_branch
          %212 = sbr.rel (%p210) target = $region16
        $region15: #{tpu_custom_call.1} parent=11 // pred_region
          _
        $region16: #{tpu_custom_call.1} parent=11 // pred_fallthru
          _
      $region12: #{tpu_custom_call.1} parent=5 // pred_fallthru
        _
      %p213 = scmp.lt.s32.totalorder %s15, 8
      // Predicated region
      $region17: #{tpu_custom_call.1} parent=5 // pred_check
        %p214 = pneg %p213
      $region18: #{tpu_custom_call.1} parent=5 // pred_check_branch
        %216 = sbr.rel (%p214) target = $region20
      $region19: #{tpu_custom_call.1} parent=5 // pred_region
        // Predicated region
        $region21: #{tpu_custom_call.1} parent=19 // pred_check
          %p217 = pneg %p56
        $region22: #{tpu_custom_call.1} parent=19 // pred_check_branch
          %219 = sbr.rel (%p217) target = $region24
        $region23: #{tpu_custom_call.1} parent=19 // pred_region
          %p220 = scmp.lt.s32.totalorder %s22, 1
          %s221 = scalar_select %p220, %s22, 1
          %p222 = scmp.lt.s32.totalorder %s23, 1
          %s223 = scalar_select %p222, %s23, 1
          %s224 = smul.addr %s221, 2
          %s225 = sadd.s32 %s223, %s224
          %s226 = smul.addr %s225, 4
          %s227 = scalar_lea.vmem %s0, %s226
        $region24: #{tpu_custom_call.1} parent=19 // pred_fallthru
          _
        // Predicated region
        $region25: #{tpu_custom_call.1} parent=19 // pred_check
          %p228 = pneg %p84
        $region26: #{tpu_custom_call.1} parent=19 // pred_check_branch
          %230 = sbr.rel (%p228) target = $region28
        $region27: #{tpu_custom_call.1} parent=19 // pred_region
          %s231 = smul.u32 16, %s24
          %p232 = scmp.lt.s32.totalorder %s22, 1
          %s233 = scalar_select %p232, %s22, 1
          %p234 = scmp.lt.s32.totalorder %s231, 31
          %s235 = scalar_select %p234, %s231, 31
          %s236 = smul.addr %s233, 32
          %s237 = sadd.s32 %s235, %s236
          %s238 = smul.addr %s237, 4
          %s239 = scalar_lea.vmem %s1, %s238
          %s240 = smul.u32 16, %s24
        $region28: #{tpu_custom_call.1} parent=19 // pred_fallthru
          _
        // Predicated region
        $region29: #{tpu_custom_call.1} parent=19 // pred_check
          %p241 = pneg %p112
        $region30: #{tpu_custom_call.1} parent=19 // pred_check_branch
          %243 = sbr.rel (%p241) target = $region32
        $region31: #{tpu_custom_call.1} parent=19 // pred_region
          %s244 = sand.u32 %s102, 1
          %s245 = sand.u32 %s102, 1
          %s246 = smul.addr %s245, 8
          %s247 = scalar_lea.vmem [#allocation6], %s246
          %s248 = smul.addr %s22, 4
          %s249 = sadd.s32 %s24, %s248
          %s250 = smul.addr %s249, 4
          %s251 = scalar_lea.vmem %s2, %s250
          // Predicated region
          $region33: #{tpu_custom_call.1} parent=31 // pred_check
            _
          $region34: #{tpu_custom_call.1} parent=31 // pred_check_branch
            %253 = sbr.rel (0) target = $region36
          $region35: #{tpu_custom_call.1} parent=31 // pred_region
            // Predicated region
            $region37: #{tpu_custom_call.1} parent=35 // pred_check
              _
            $region38: #{tpu_custom_call.1} parent=35 // pred_check_branch
              %255 = sbr.rel target = $region40
            $region39: #{tpu_custom_call.1} parent=35 // pred_region
              // Predicated region
              $region52: #{tpu_custom_call.1} parent=39 // pred_check
                _
              $region53: #{tpu_custom_call.1} parent=39 // pred_check_branch
                %272 = sbr.rel (0) target = $region55
              $region54: #{tpu_custom_call.1} parent=39 // pred_region
                loop: start=0, step=1, limit=1
                $region56: #{tpu_custom_call.1} parent=54 // loop_pre_header
                  _
                $region57: #{tpu_custom_call.1} parent=54 // loop_header
                  %s274 = sphi 0, %s278
                  %p275 = scmp.ge.s32.totalorder %s274, 1
                  %s279 = sphi %s251, %s251
                  %s280 = sphi %s247, %s247
                $region58: #{tpu_custom_call.1} parent=54 // loop_header_branch
                  %277 = sbr.rel (%p275) target = $region62
                $region59: #{tpu_custom_call.1} parent=54 // loop_body
                  _
                $region60: #{tpu_custom_call.1} parent=54 // loop_footer
                  %s278 = sadd.s32 1, %s274
                $region61: #{tpu_custom_call.1} parent=54 // loop_footer_branch
                  %273 = sbr.rel target = $region57
                $region62: #{tpu_custom_call.1} parent=54 // loop_exit
                  _
                loop: start=0, step=1, limit=1
                $region63: #{tpu_custom_call.1} parent=54 // loop_pre_header
                  _
                $region64: #{tpu_custom_call.1} parent=54 // loop_header
                  %s283 = sphi 0, %s287
                  %p284 = scmp.ge.s32.totalorder %s283, 1
                  %s288 = sphi %s251, %s251
                  %s289 = sphi %s247, %s247
                $region65: #{tpu_custom_call.1} parent=54 // loop_header_branch
                  %286 = sbr.rel (%p284) target = $region69
                $region66: #{tpu_custom_call.1} parent=54 // loop_body
                  %v290 = vld [vmem:[%s288] sm:$0xf]
                  %291 = vst [vmem:[%s289] sm:$0xf] %v290
                  %v292 = vld [vmem:[%s288 + $0x8] sm:$0xf]
                  %293 = vst [vmem:[%s289 + $0x4] sm:$0xf] %v292
                $region67: #{tpu_custom_call.1} parent=54 // loop_footer
                  %s287 = sadd.s32 1, %s283
                $region68: #{tpu_custom_call.1} parent=54 // loop_footer_branch
                  %282 = sbr.rel target = $region64
                $region69: #{tpu_custom_call.1} parent=54 // loop_exit
                  _
              $region55: #{tpu_custom_call.1} parent=39 // pred_fallthru
                _
            $region40: #{tpu_custom_call.1} parent=35 // pred_fallthru
              _
            // Predicated region
            $region41: #{tpu_custom_call.1} parent=35 // pred_check
              _
            $region42: #{tpu_custom_call.1} parent=35 // pred_check_branch
              %257 = sbr.rel (0) target = $region44
            $region43: #{tpu_custom_call.1} parent=35 // pred_region
              loop: start=0, step=1, limit=1
              $region45: #{tpu_custom_call.1} parent=43 // loop_pre_header
                _
              $region46: #{tpu_custom_call.1} parent=43 // loop_header
                %s260 = sphi 0, %s264
                %p261 = scmp.ge.s32.totalorder %s260, 1
                %s265 = sphi %s251, %s251
                %s266 = sphi %s247, %s247
              $region47: #{tpu_custom_call.1} parent=43 // loop_header_branch
                %263 = sbr.rel (%p261) target = $region51
              $region48: #{tpu_custom_call.1} parent=43 // loop_body
                %v267 = vld [vmem:[%s265] sm:$0xf]
                %268 = vst [vmem:[%s266] sm:$0xf] %v267
                %v269 = vld [vmem:[%s265 + $0x8] sm:$0xf]
                %270 = vst [vmem:[%s266 + $0x4] sm:$0xf] %v269
              $region49: #{tpu_custom_call.1} parent=43 // loop_footer
                %s264 = sadd.s32 1, %s260
              $region50: #{tpu_custom_call.1} parent=43 // loop_footer_branch
                %259 = sbr.rel target = $region46
              $region51: #{tpu_custom_call.1} parent=43 // loop_exit
                _
            $region44: #{tpu_custom_call.1} parent=35 // pred_fallthru
              _
          $region36: #{tpu_custom_call.1} parent=31 // pred_fallthru
            _
          %294 = vnop
        $region32: #{tpu_custom_call.1} parent=19 // pred_fallthru
          _
        // Predicated region
        $region70: #{tpu_custom_call.1} parent=19 // pred_check
          %p295 = pneg %p140
        $region71: #{tpu_custom_call.1} parent=19 // pred_check_branch
          %297 = sbr.rel (%p295) target = $region73
        $region72: #{tpu_custom_call.1} parent=19 // pred_region
          %s298 = sand.u32 %s130, 1
          %s299 = sand.u32 %s130, 1
          %s300 = smul.addr %s299, 16
          %s301 = scalar_lea.vmem [#allocation7], %s300
          %s302 = smul.addr %s22, 4
          %s303 = sadd.s32 %s23, %s302
          %s304 = smul.addr %s303, 8
          %s305 = scalar_lea.vmem %s3, %s304
          // Predicated region
          $region74: #{tpu_custom_call.1} parent=72 // pred_check
            _
          $region75: #{tpu_custom_call.1} parent=72 // pred_check_branch
            %307 = sbr.rel (0) target = $region77
          $region76: #{tpu_custom_call.1} parent=72 // pred_region
            // Predicated region
            $region78: #{tpu_custom_call.1} parent=76 // pred_check
              _
            $region79: #{tpu_custom_call.1} parent=76 // pred_check_branch
              %309 = sbr.rel (0) target = $region81
            $region80: #{tpu_custom_call.1} parent=76 // pred_region
              // Predicated region
              $region93: #{tpu_custom_call.1} parent=80 // pred_check
                _
              $region94: #{tpu_custom_call.1} parent=80 // pred_check_branch
                %326 = sbr.rel (0) target = $region96
              $region95: #{tpu_custom_call.1} parent=80 // pred_region
                loop: start=0, step=1, limit=1
                $region97: #{tpu_custom_call.1} parent=95 // loop_pre_header
                  _
                $region98: #{tpu_custom_call.1} parent=95 // loop_header
                  %s328 = sphi 0, %s332
                  %p329 = scmp.ge.s32.totalorder %s328, 1
                  %s333 = sphi %s305, %s305
                  %s334 = sphi %s301, %s301
                $region99: #{tpu_custom_call.1} parent=95 // loop_header_branch
                  %331 = sbr.rel (%p329) target = $region103
                $region100: #{tpu_custom_call.1} parent=95 // loop_body
                  %v335 = vld [vmem:[%s333] sm:$0xff]
                  %336 = vst [vmem:[%s334] sm:$0xff] %v335
                  %v337 = vld [vmem:[%s333 + $0x10] sm:$0xff]
                  %338 = vst [vmem:[%s334 + $0x8] sm:$0xff] %v337
                $region101: #{tpu_custom_call.1} parent=95 // loop_footer
                  %s332 = sadd.s32 1, %s328
                $region102: #{tpu_custom_call.1} parent=95 // loop_footer_branch
                  %327 = sbr.rel target = $region98
                $region103: #{tpu_custom_call.1} parent=95 // loop_exit
                  _
              $region96: #{tpu_custom_call.1} parent=80 // pred_fallthru
                _
              // Predicated region
              $region104: #{tpu_custom_call.1} parent=80 // pred_check
                _
              $region105: #{tpu_custom_call.1} parent=80 // pred_check_branch
                %340 = sbr.rel target = $region107
              $region106: #{tpu_custom_call.1} parent=80 // pred_region
                _
              $region107: #{tpu_custom_call.1} parent=80 // pred_fallthru
                _
            $region81: #{tpu_custom_call.1} parent=76 // pred_fallthru
              _
            // Predicated region
            $region82: #{tpu_custom_call.1} parent=76 // pred_check
              _
            $region83: #{tpu_custom_call.1} parent=76 // pred_check_branch
              %311 = sbr.rel target = $region85
            $region84: #{tpu_custom_call.1} parent=76 // pred_region
              loop: start=0, step=1, limit=1
              $region86: #{tpu_custom_call.1} parent=84 // loop_pre_header
                _
              $region87: #{tpu_custom_call.1} parent=84 // loop_header
                %s314 = sphi 0, %s318
                %p315 = scmp.ge.s32.totalorder %s314, 1
                %s319 = sphi %s305, %s305
                %s320 = sphi %s301, %s301
              $region88: #{tpu_custom_call.1} parent=84 // loop_header_branch
                %317 = sbr.rel (%p315) target = $region92
              $region89: #{tpu_custom_call.1} parent=84 // loop_body
                %v321 = vld [vmem:[%s319] sm:$0xff]
                %322 = vst [vmem:[%s320] sm:$0xff] %v321
                %v323 = vld [vmem:[%s319 + $0x10] sm:$0xff]
                %324 = vst [vmem:[%s320 + $0x8] sm:$0xff] %v323
              $region90: #{tpu_custom_call.1} parent=84 // loop_footer
                %s318 = sadd.s32 1, %s314
              $region91: #{tpu_custom_call.1} parent=84 // loop_footer_branch
                %313 = sbr.rel target = $region87
              $region92: #{tpu_custom_call.1} parent=84 // loop_exit
                _
            $region85: #{tpu_custom_call.1} parent=76 // pred_fallthru
              _
          $region77: #{tpu_custom_call.1} parent=72 // pred_fallthru
            _
          %341 = vnop
        $region73: #{tpu_custom_call.1} parent=19 // pred_fallthru
          _
      $region20: #{tpu_custom_call.1} parent=5 // pred_fallthru
        _
      %p342 = scmp.le.s32.totalorder 1, %s15
      %p343 = scmp.lt.s32.totalorder %s15, 9
      %p344 = pnand %p342, %p343
      %p345 = pneg %p344
      // Predicated region
      $region108: #{tpu_custom_call.1} parent=5 // pred_check
        _
      $region109: #{tpu_custom_call.1} parent=5 // pred_check_branch
        %347 = sbr.rel (%p344) target = $region111
      $region110: #{tpu_custom_call.1} parent=5 // pred_region
        %s348 = ssub.s32 %s15, 1
        %s349 = sand.u32 %s105, 1
        %s350 = sand.u32 %s105, 1
        %s351 = smul.addr %s350, 8
        %s352 = scalar_lea.vmem [#allocation6], %s351
        // Predicated region
        $region112: #{tpu_custom_call.1} parent=110 // pred_check
          %p353 = pneg %p118
        $region113: #{tpu_custom_call.1} parent=110 // pred_check_branch
          %355 = sbr.rel (%p353) target = $region115
        $region114: #{tpu_custom_call.1} parent=110 // pred_region
          _
        $region115: #{tpu_custom_call.1} parent=110 // pred_fallthru
          _
        %s356 = sand.u32 %s133, 1
        %s357 = sand.u32 %s133, 1
        %s358 = smul.addr %s357, 16
        %s359 = scalar_lea.vmem [#allocation7], %s358
        // Predicated region
        $region116: #{tpu_custom_call.1} parent=110 // pred_check
          %p360 = pneg %p146
        $region117: #{tpu_custom_call.1} parent=110 // pred_check_branch
          %362 = sbr.rel (%p360) target = $region119
        $region118: #{tpu_custom_call.1} parent=110 // pred_region
          _
        $region119: #{tpu_custom_call.1} parent=110 // pred_fallthru
          _
        %p363 = scmp.lt.s32.totalorder %s25, 1
        %s364 = scalar_select %p363, %s25, 1
        %p365 = scmp.lt.s32.totalorder %s26, 1
        %s366 = scalar_select %p365, %s26, 1
        %s367 = smul.addr %s364, 2
        %s368 = sadd.s32 %s366, %s367
        %s369 = smul.addr %s368, 4
        %s370 = scalar_lea.vmem %s0, %s369
        %p371 = pneg %p62
        %p372 = pneg %p59
        %s373 = smul.u32 16, %s27
        %p374 = scmp.lt.s32.totalorder %s25, 1
        %s375 = scalar_select %p374, %s25, 1
        %p376 = scmp.lt.s32.totalorder %s373, 31
        %s377 = scalar_select %p376, %s373, 31
        %s378 = smul.addr %s375, 32
        %s379 = sadd.s32 %s377, %s378
        %s380 = smul.addr %s379, 4
        %s381 = scalar_lea.vmem %s1, %s380
        %p382 = pneg %p90
        %p383 = pneg %p87
        %s384 = sand.u32 %s105, 1
        %s385 = sand.u32 %s105, 1
        %s386 = smul.addr %s385, 8
        %s387 = scalar_lea.vmem [#allocation6], %s386
        %p388 = pneg %p118
        %p389 = pneg %p115
        %s390 = sand.u32 %s133, 1
        %s391 = sand.u32 %s133, 1
        %s392 = smul.addr %s391, 16
        %s393 = scalar_lea.vmem [#allocation7], %s392
        %p394 = pneg %p146
        %p395 = pneg %p143
        %p396 = pneg %p167
        %p397 = pneg %p164
        %p398 = pneg %p195
        %p399 = pneg %p192
        %s400 = sand.u32 %s182, 1
        %s401 = scalar_lea.sflag [#allocation9], %s400
        %s402 = sand.u32 %s182, 1
        %s403 = smul.addr %s402, 16
        %s404 = scalar_lea.vmem [#allocation8], %s403
        %p405 = scmp.lt.s32.totalorder %s25, 1
        %s406 = scalar_select %p405, %s25, 1
        %p407 = scmp.lt.s32.totalorder %s26, 1
        %s408 = scalar_select %p407, %s26, 1
        %s409 = smul.addr %s406, 2
        %s410 = sadd.s32 %s408, %s409
        %s411 = smul.addr %s410, 4
        %s412 = scalar_lea.vmem %s0, %s411
        %s413 = smul.u32 16, %s27
        %p414 = scmp.lt.s32.totalorder %s25, 1
        %s415 = scalar_select %p414, %s25, 1
        %p416 = scmp.lt.s32.totalorder %s413, 31
        %s417 = scalar_select %p416, %s413, 31
        %s418 = smul.addr %s415, 32
        %s419 = sadd.s32 %s417, %s418
        %s420 = smul.addr %s419, 4
        %s421 = scalar_lea.vmem %s1, %s420
        %s422 = smul.u32 16, %s27
        %p424 = scmp.eq.s32.totalorder %s27, 0
        // Predicated region
        $region120: #{tpu_custom_call.1} parent=110 // pred_check
          %p425 = pneg %p424
        $region121: #{tpu_custom_call.1} parent=110 // pred_check_branch
          %427 = sbr.rel (%p425) target = $region123
        $region122: #{tpu_custom_call.1} parent=110 // pred_region
          %428 = vst [vmem:[#allocation2] sm:$0x1] -inf
          %429 = vst [vmem:[#allocation3] sm:$0x1] 0.0
          %430 = vst [vmem:[#allocation4] sm:$0xff] 0.0
          %431 = vst [vmem:[#allocation4 + $0x8] sm:$0xff] 0.0
        $region123: #{tpu_custom_call.1} parent=110 // pred_fallthru
          _
        %v432 = vld [vmem:[%s421] sm:$0xf]
        %v433 = vld [vmem:[%s421 + $0x4] sm:$0xf]
        %v434 = vld [vmem:[%s421 + $0x8] sm:$0xf]
        %v435 = vld [vmem:[%s421 + $0xc] sm:$0xf]
        %v436 = vld [vmem:[%s421 + $0x10] sm:$0xf]
        %v437 = vld [vmem:[%s421 + $0x14] sm:$0xf]
        %v438 = vld [vmem:[%s421 + $0x18] sm:$0xf]
        %v439 = vld [vmem:[%s421 + $0x1c] sm:$0xf]
        %v440 = vld [vmem:[%s421 + $0x20] sm:$0xf]
        %v441 = vld [vmem:[%s421 + $0x24] sm:$0xf]
        %v442 = vld [vmem:[%s421 + $0x28] sm:$0xf]
        %v443 = vld [vmem:[%s421 + $0x2c] sm:$0xf]
        %v444 = vld [vmem:[%s421 + $0x30] sm:$0xf]
        %v445 = vld [vmem:[%s421 + $0x34] sm:$0xf]
        %v446 = vld [vmem:[%s421 + $0x38] sm:$0xf]
        %v447 = vld [vmem:[%s421 + $0x3c] sm:$0xf]
        %v448 = vld [vmem:[%s412] sm:$0xf]
        %v465 = vunpack.c.l.b16 %v432
        %v466 = vunpack.c.l.b16 %v433
        %v467 = vunpack.c.l.b16 %v434
        %v468 = vunpack.c.l.b16 %v435
        %v469 = vunpack.c.l.b16 %v436
        %v470 = vunpack.c.l.b16 %v437
        %v471 = vunpack.c.l.b16 %v438
        %v472 = vunpack.c.l.b16 %v439
        %v473 = vunpack.c.l.b16 %v440
        %v474 = vunpack.c.l.b16 %v441
        %v475 = vunpack.c.l.b16 %v442
        %v476 = vunpack.c.l.b16 %v443
        %v477 = vunpack.c.l.b16 %v444
        %v478 = vunpack.c.l.b16 %v445
        %v479 = vunpack.c.l.b16 %v446
        %v480 = vunpack.c.l.b16 %v447
        %v481 = vpack.c.b16 %v466, %v465
        %v482 = vpack.c.b16 %v468, %v467
        %v483 = vpack.c.b16 %v470, %v469
        %v484 = vpack.c.b16 %v472, %v471
        %v485 = vpack.c.b16 %v474, %v473
        %v486 = vpack.c.b16 %v476, %v475
        %v487 = vpack.c.b16 %v478, %v477
        %v488 = vpack.c.b16 %v480, %v479
        %vm489 = vcmask 64512
        %v491 = vsel %vm489, %v481, 0
        %v494 = vsel %vm489, %v482, 0
        %v497 = vsel %vm489, %v483, 0
        %v500 = vsel %vm489, %v484, 0
        %v503 = vsel %vm489, %v485, 0
        %v506 = vsel %vm489, %v486, 0
        %v509 = vsel %vm489, %v487, 0
        %v512 = vsel %vm489, %v488, 0
        %vm514 = vcmask 1043456
        %v516 = vsel %vm514, %v448, 0
        %518 = vmatprep.subr.bf16.mxu0 0
        %519 = vmatpush1.bf16.msra.mxu0 %v516
        %520 = vmatprep.subr.bf16.mxu0 0
        %521 = vmatpush1.bf16.msra.mxu0 0
        %522 = vmatprep.subr.bf16.mxu0 0
        %523 = vmatpush1.bf16.msra.mxu0 0
        %524 = vmatprep.subr.bf16.mxu0 0
        %525 = vmatpush1.bf16.msra.mxu0 0
        %526 = vmatprep.subr.bf16.mxu0 0
        %527 = vmatpush1.bf16.msra.mxu0 0
        %528 = vmatprep.subr.bf16.mxu0 0
        %529 = vmatpush1.bf16.msra.mxu0 0
        %530 = vmatprep.subr.bf16.mxu0 0
        %531 = vmatpush1.bf16.msra.mxu0 0
        %532 = vmatprep.subr.bf16.mxu0 0
        %533 = vmatpush1.bf16.msra.mxu0 0
        %534 = vmatprep.subr.bf16.mxu0 0
        %535 = vmatpush1.bf16.msra.mxu0 0
        %536 = vmatprep.subr.bf16.mxu0 0
        %537 = vmatpush1.bf16.msra.mxu0 0
        %538 = vmatprep.subr.bf16.mxu0 0
        %539 = vmatpush1.bf16.msra.mxu0 0
        %540 = vmatprep.subr.bf16.mxu0 0
        %541 = vmatpush1.bf16.msra.mxu0 0
        %542 = vmatprep.subr.bf16.mxu0 0
        %543 = vmatpush1.bf16.msra.mxu0 0
        %544 = vmatprep.subr.bf16.mxu0 0
        %545 = vmatpush1.bf16.msra.mxu0 0
        %546 = vmatprep.subr.bf16.mxu0 0
        %547 = vmatpush1.bf16.msra.mxu0 0
        %548 = vmatprep.subr.bf16.mxu0 0
        %549 = vmatpush1.bf16.msra.mxu0 0
        %550 = vmatprep.mubr.bf16.mxu0 0
        %551 = vmatmul.mubr.bf16.gmra.mrb[0].mxu0 %v491
        %v552 = vpop.f32.mrb[0].mxu0
        %v553 = vadd.f32 0.0, %v552
        %v554 = vpop.f32.mrb[0].mxu0
        %v555 = vpop.f32.mrb[0].mxu0
        %v556 = vadd.f32 0.0, %v555
        %v557 = vpop.f32.mrb[0].mxu0
        %558 = vmatprep.mubr.bf16.mxu0 0
        %559 = vmatmul.mubr.bf16.gmra.mrb[0].mxu0 %v494
        %v560 = vpop.f32.mrb[0].mxu0
        %v561 = vadd.f32 0.0, %v560
        %v562 = vpop.f32.mrb[0].mxu0
        %v563 = vpop.f32.mrb[0].mxu0
        %v564 = vadd.f32 0.0, %v563
        %v565 = vpop.f32.mrb[0].mxu0
        %566 = vmatprep.mubr.bf16.mxu0 0
        %567 = vmatmul.mubr.bf16.gmra.mrb[0].mxu0 %v497
        %v568 = vpop.f32.mrb[0].mxu0
        %v569 = vadd.f32 0.0, %v568
        %v570 = vpop.f32.mrb[0].mxu0
        %v571 = vpop.f32.mrb[0].mxu0
        %v572 = vadd.f32 0.0, %v571
        %v573 = vpop.f32.mrb[0].mxu0
        %574 = vmatprep.mubr.bf16.mxu0 0
        %575 = vmatmul.mubr.bf16.gmra.mrb[0].mxu0 %v500
        %v576 = vpop.f32.mrb[0].mxu0
        %v577 = vadd.f32 0.0, %v576
        %v578 = vpop.f32.mrb[0].mxu0
        %v579 = vpop.f32.mrb[0].mxu0
        %v580 = vadd.f32 0.0, %v579
        %v581 = vpop.f32.mrb[0].mxu0
        %582 = vmatprep.mubr.bf16.mxu0 0
        %583 = vmatmul.mubr.bf16.gmra.mrb[0].mxu0 %v503
        %v584 = vpop.f32.mrb[0].mxu0
        %v585 = vadd.f32 0.0, %v584
        %v586 = vpop.f32.mrb[0].mxu0
        %v587 = vpop.f32.mrb[0].mxu0
        %v588 = vadd.f32 0.0, %v587
        %v589 = vpop.f32.mrb[0].mxu0
        %590 = vmatprep.mubr.bf16.mxu0 0
        %591 = vmatmul.mubr.bf16.gmra.mrb[0].mxu0 %v506
        %v592 = vpop.f32.mrb[0].mxu0
        %v593 = vadd.f32 0.0, %v592
        %v594 = vpop.f32.mrb[0].mxu0
        %v595 = vpop.f32.mrb[0].mxu0
        %v596 = vadd.f32 0.0, %v595
        %v597 = vpop.f32.mrb[0].mxu0
        %598 = vmatprep.mubr.bf16.mxu0 0
        %599 = vmatmul.mubr.bf16.gmra.mrb[0].mxu0 %v509
        %v600 = vpop.f32.mrb[0].mxu0
        %v601 = vadd.f32 0.0, %v600
        %v602 = vpop.f32.mrb[0].mxu0
        %v603 = vpop.f32.mrb[0].mxu0
        %v604 = vadd.f32 0.0, %v603
        %v605 = vpop.f32.mrb[0].mxu0
        %606 = vmatprep.mubr.bf16.mxu0 0
        %607 = vmatmul.mubr.bf16.gmra.mrb[0].mxu0 %v512
        %v608 = vpop.f32.mrb[0].mxu0
        %v609 = vadd.f32 0.0, %v608
        %v610 = vpop.f32.mrb[0].mxu0
        %v611 = vpop.f32.mrb[0].mxu0
        %v612 = vadd.f32 0.0, %v611
        %v613 = vpop.f32.mrb[0].mxu0
        %614 = vdwg.mxu0
        %v615 = vld [vmem:[#allocation2] sm:$0x1]
        %v616 = vmax.f32 %v553, %v569
        %v617 = vmax.f32 %v556, %v572
        %v618 = vmax.f32 %v561, %v577
        %v619 = vmax.f32 %v564, %v580
        %v620 = vmax.f32 %v616, %v585
        %v621 = vmax.f32 %v617, %v588
        %v622 = vmax.f32 %v618, %v593
        %v623 = vmax.f32 %v619, %v596
        %v624 = vmax.f32 %v620, %v601
        %v625 = vmax.f32 %v621, %v604
        %v626 = vmax.f32 %v622, %v609
        %v627 = vmax.f32 %v623, %v612
        %v628 = vmax.f32 %v624, %v625
        %v629 = vmax.f32 %v626, %v627
        %v630 = vmax.f32 %v628, %v629
        %v631 = vrot.slane %v630, 4
        %v632 = vmax.f32 %v630, %v631
        %v633 = vrot.slane %v632, 2
        %v634 = vmax.f32 %v632, %v633
        %v635 = vrot.slane %v634, 1
        %v636 = vmax.f32 %v634, %v635
        %v637 = vmax.f32 %v615, %v636
        %v638 = vsub.f32 %v615, %v637
        %v639 = vmul.f32 %v638, 1.442695
        %v640 = vpow.pop %v639
        %v642 = vlaneseq
        %v643 = vshrl.u32 %v642, 7
        %v644 = vsub.s32 0, %v643
        %v645 = vrot.slane %v637, %v644
        %v647 = vsub.f32 %v553, %v645
        %v648 = vsub.f32 %v556, %v645
        %v649 = vsub.f32 %v561, %v645
        %v650 = vsub.f32 %v564, %v645
        %v651 = vsub.f32 %v569, %v645
        %v652 = vsub.f32 %v572, %v645
        %v653 = vsub.f32 %v577, %v645
        %v654 = vsub.f32 %v580, %v645
        %v655 = vsub.f32 %v585, %v645
        %v656 = vsub.f32 %v588, %v645
        %v657 = vsub.f32 %v593, %v645
        %v658 = vsub.f32 %v596, %v645
        %v659 = vsub.f32 %v601, %v645
        %v660 = vsub.f32 %v604, %v645
        %v661 = vsub.f32 %v609, %v645
        %v662 = vsub.f32 %v612, %v645
        %v663 = vmul.f32 %v647, 1.442695
        %v664 = vpow.pop %v663
        %v665 = vmul.f32 %v648, 1.442695
        %v666 = vpow.pop %v665
        %v667 = vmul.f32 %v649, 1.442695
        %v668 = vpow.pop %v667
        %v669 = vmul.f32 %v650, 1.442695
        %v670 = vpow.pop %v669
        %v671 = vmul.f32 %v651, 1.442695
        %v672 = vpow.pop %v671
        %v673 = vmul.f32 %v652, 1.442695
        %v674 = vpow.pop %v673
        %v675 = vmul.f32 %v653, 1.442695
        %v676 = vpow.pop %v675
        %v677 = vmul.f32 %v654, 1.442695
        %v678 = vpow.pop %v677
        %v679 = vmul.f32 %v655, 1.442695
        %v680 = vpow.pop %v679
        %v681 = vmul.f32 %v656, 1.442695
        %v682 = vpow.pop %v681
        %v683 = vmul.f32 %v657, 1.442695
        %v684 = vpow.pop %v683
        %v685 = vmul.f32 %v658, 1.442695
        %v686 = vpow.pop %v685
        %v687 = vmul.f32 %v659, 1.442695
        %v688 = vpow.pop %v687
        %v689 = vmul.f32 %v660, 1.442695
        %v690 = vpow.pop %v689
        %v691 = vmul.f32 %v661, 1.442695
        %v692 = vpow.pop %v691
        %v693 = vmul.f32 %v662, 1.442695
        %v694 = vpow.pop %v693
        %v695 = vpack.c.bf16 %v666, %v664
        %v696 = vpack.c.bf16 %v670, %v668
        %v697 = vpack.c.bf16 %v674, %v672
        %v698 = vpack.c.bf16 %v678, %v676
        %v699 = vpack.c.bf16 %v682, %v680
        %v700 = vpack.c.bf16 %v686, %v684
        %v701 = vpack.c.bf16 %v690, %v688
        %v702 = vpack.c.bf16 %v694, %v692
        %v703 = vld [vmem:[#allocation3] sm:$0x1]
        %v704 = vmul.f32 %v640, %v703
        %v705 = vunpack.c.l.bf16 %v695
        %v706 = vunpack.c.h.bf16 %v695
        %v707 = vunpack.c.l.bf16 %v696
        %v708 = vunpack.c.h.bf16 %v696
        %v709 = vunpack.c.l.bf16 %v697
        %v710 = vunpack.c.h.bf16 %v697
        %v711 = vunpack.c.l.bf16 %v698
        %v712 = vunpack.c.h.bf16 %v698
        %v713 = vunpack.c.l.bf16 %v699
        %v714 = vunpack.c.h.bf16 %v699
        %v715 = vunpack.c.l.bf16 %v700
        %v716 = vunpack.c.h.bf16 %v700
        %v717 = vunpack.c.l.bf16 %v701
        %v718 = vunpack.c.h.bf16 %v701
        %v719 = vunpack.c.l.bf16 %v702
        %v720 = vunpack.c.h.bf16 %v702
        %v721 = vadd.f32 %v705, %v706
        %v722 = vadd.f32 %v721, %v707
        %v723 = vadd.f32 %v722, %v708
        %v724 = vadd.f32 %v723, %v709
        %v725 = vadd.f32 %v724, %v710
        %v726 = vadd.f32 %v725, %v711
        %v727 = vadd.f32 %v726, %v712
        %v728 = vadd.f32 %v727, %v713
        %v729 = vadd.f32 %v728, %v714
        %v730 = vadd.f32 %v729, %v715
        %v731 = vadd.f32 %v730, %v716
        %v732 = vadd.f32 %v731, %v717
        %v733 = vadd.f32 %v732, %v718
        %v734 = vadd.f32 %v733, %v719
        %v735 = vadd.f32 %v734, %v720
        %v736 = vrot.slane %v735, 4
        %v737 = vadd.f32 %v735, %v736
        %v738 = vrot.slane %v737, 2
        %v739 = vadd.f32 %v737, %v738
        %v740 = vrot.slane %v739, 1
        %v741 = vadd.f32 %v739, %v740
        %v742 = vadd.f32 %v704, %v741
        %743 = vst [vmem:[#allocation3] sm:$0x1] %v742
        %v744 = vld [vmem:[#allocation4] sm:$0xff]
        %v745 = vld [vmem:[#allocation4 + $0x8] sm:$0xff]
        %v747 = vlaneseq
        %v748 = vshrl.u32 %v747, 7
        %v749 = vsub.s32 0, %v748
        %v750 = vrot.slane %v640, %v749
        %v752 = vmul.f32 %v750, %v744
        %v753 = vmul.f32 %v750, %v745
        %v754 = vld [vmem:[%s352] sm:$0xf]
        %v755 = vld [vmem:[%s352 + $0x4] sm:$0xf]
        %v758 = vunpack.c.l.b16 %v754
        %v759 = vunpack.c.l.b16 %v755
        %v760 = vpack.c.b16 %v759, %v758
        %762 = vmatprep.subr.bf16.mxu0 0
        %763 = vmatpush1.bf16.msra.mxu0 %v695
        %764 = vmatprep.subr.bf16.mxu0 0
        %765 = vmatpush1.bf16.msra.mxu0 %v696
        %766 = vmatprep.subr.bf16.mxu0 0
        %767 = vmatpush1.bf16.msra.mxu0 %v697
        %768 = vmatprep.subr.bf16.mxu0 0
        %769 = vmatpush1.bf16.msra.mxu0 %v698
        %770 = vmatprep.subr.bf16.mxu0 0
        %771 = vmatpush1.bf16.msra.mxu0 %v699
        %772 = vmatprep.subr.bf16.mxu0 0
        %773 = vmatpush1.bf16.msra.mxu0 %v700
        %774 = vmatprep.subr.bf16.mxu0 0
        %775 = vmatpush1.bf16.msra.mxu0 %v701
        %776 = vmatprep.subr.bf16.mxu0 0
        %777 = vmatpush1.bf16.msra.mxu0 %v702
        %778 = vmatprep.subr.bf16.mxu0 0
        %779 = vmatpush1.bf16.msra.mxu0 0
        %780 = vmatprep.subr.bf16.mxu0 0
        %781 = vmatpush1.bf16.msra.mxu0 0
        %782 = vmatprep.subr.bf16.mxu0 0
        %783 = vmatpush1.bf16.msra.mxu0 0
        %784 = vmatprep.subr.bf16.mxu0 0
        %785 = vmatpush1.bf16.msra.mxu0 0
        %786 = vmatprep.subr.bf16.mxu0 0
        %787 = vmatpush1.bf16.msra.mxu0 0
        %788 = vmatprep.subr.bf16.mxu0 0
        %789 = vmatpush1.bf16.msra.mxu0 0
        %790 = vmatprep.subr.bf16.mxu0 0
        %791 = vmatpush1.bf16.msra.mxu0 0
        %792 = vmatprep.subr.bf16.mxu0 0
        %793 = vmatpush1.bf16.msra.mxu0 0
        %794 = vmatprep.mubr.bf16.mxu0 0
        %795 = vmatmul.mubr.bf16.gmra.mrb[0].mxu0 %v760
        %v796 = vpop.f32.mrb[0].mxu0
        %v797 = vadd.f32 0.0, %v796
        %v798 = vpop.f32.mrb[0].mxu0
        %v799 = vpop.f32.mrb[0].mxu0
        %v800 = vadd.f32 0.0, %v799
        %v801 = vpop.f32.mrb[0].mxu0
        %802 = vdwg.mxu0
        %v803 = vadd.f32 %v752, %v797
        %v804 = vadd.f32 %v753, %v800
        %805 = vst [vmem:[#allocation4] sm:$0xff] %v803
        %806 = vst [vmem:[#allocation4 + $0x8] sm:$0xff] %v804
        %807 = vst [vmem:[#allocation2] sm:$0x1] %v637
        %p808 = scmp.eq.s32.totalorder %s27, 1
        // Predicated region
        $region124: #{tpu_custom_call.1} parent=110 // pred_check
          %p809 = pneg %p808
        $region125: #{tpu_custom_call.1} parent=110 // pred_check_branch
          %811 = sbr.rel (%p809) target = $region127
        $region126: #{tpu_custom_call.1} parent=110 // pred_region
          %v812 = vld [vmem:[#allocation3] sm:$0x1]
          %v813 = vrcp.pop %v812
          %s814 = sld [smem:[#allocation5]]
          %v815 = vld [vmem:[#allocation4] sm:$0xff]
          %v816 = vld [vmem:[#allocation4 + $0x8] sm:$0xff]
          %v818 = vlaneseq
          %v819 = vshrl.u32 %v818, 7
          %v820 = vsub.s32 0, %v819
          %v821 = vrot.slane %v813, %v820
          %v823 = vmul.f32 %v815, %v821
          %v824 = vmul.f32 %v816, %v821
          %v825 = vstv %s814
          %v826 = vmul.f32 %v825, %v823
          %v827 = vmul.f32 %v825, %v824
          %v828 = vld [vmem:[%s359] sm:$0xff]
          %v829 = vld [vmem:[%s359 + $0x8] sm:$0xff]
          %v830 = vadd.f32 %v826, %v828
          %v831 = vadd.f32 %v827, %v829
          %832 = vst [vmem:[%s404] sm:$0xff] %v830
          %833 = vst [vmem:[%s404 + $0x8] sm:$0xff] %v831
        $region127: #{tpu_custom_call.1} parent=110 // pred_fallthru
          _
        %s834 = sand.u32 %s182, 1
        %s835 = scalar_lea.sflag [#allocation9], %s834
        %s836 = sand.u32 %s182, 1
        %s837 = smul.addr %s836, 16
        %s838 = scalar_lea.vmem [#allocation8], %s837
        // Predicated region
        $region128: #{tpu_custom_call.1} parent=110 // pred_check
          %p839 = pneg %p192
        $region129: #{tpu_custom_call.1} parent=110 // pred_check_branch
          %841 = sbr.rel (%p839) target = $region131
        $region130: #{tpu_custom_call.1} parent=110 // pred_region
          %s843 = ssub.s32 256, 256
          %844 = vsyncadd %s835, %s843
          %s845 = smul.addr %s25, 4
          %s846 = sadd.s32 %s26, %s845
          %s847 = smul.addr %s846, 128
          %s848 = scalar_lea.hbm %s5, %s847
          %s849 = sshll.u32 %s838, 4
          %s850 = int_to_ptr.vmem [resolvable:$true] %s849
          %855 = dma.vmem_to_hbm [thread:$0]  %s850, 256, %s848, %s835, 128, 256, 8
        $region131: #{tpu_custom_call.1} parent=110 // pred_fallthru
          _
      $region111: #{tpu_custom_call.1} parent=5 // pred_fallthru
        _
      %p856 = scmp.le.s32.totalorder 2, %s15
      // Predicated region
      $region132: #{tpu_custom_call.1} parent=5 // pred_check
        %p857 = pneg %p856
      $region133: #{tpu_custom_call.1} parent=5 // pred_check_branch
        %859 = sbr.rel (%p857) target = $region135
      $region134: #{tpu_custom_call.1} parent=5 // pred_region
        %s860 = ssub.s32 %s15, 2
        // Predicated region
        $region136: #{tpu_custom_call.1} parent=134 // pred_check
          %p861 = pneg %p198
        $region137: #{tpu_custom_call.1} parent=134 // pred_check_branch
          %863 = sbr.rel (%p861) target = $region139
        $region138: #{tpu_custom_call.1} parent=134 // pred_region
          %s864 = sand.u32 %s183, 1
          %s865 = scalar_lea.sflag [#allocation9], %s864
          %s866 = sand.u32 %s183, 1
          %s867 = smul.addr %s866, 16
          %s868 = scalar_lea.vmem [#allocation8], %s867
          %869 = dma.done %s865, 256
        $region139: #{tpu_custom_call.1} parent=134 // pred_fallthru
          _
      $region135: #{tpu_custom_call.1} parent=5 // pred_fallthru
        _
    $region6: #{tpu_custom_call.1} parent=1 // loop_footer
      %s19 = sadd.s32 1, %s15
    $region7: #{tpu_custom_call.1} parent=1 // loop_footer_branch
      %14 = sbr.rel target = $region3
    $region8: #{tpu_custom_call.1} parent=1 // loop_exit
      _
    %870 = vsyncpa [#allocation9], 1
    %s871 = scalar_lea.sflag [#allocation9], 1
    %872 = vsyncpa %s871, 1

</llo_original>
